<compile_context>
chip_gen: v7x
topology: tpu7x:2x2x1
jax: 0.10.0
libtpu: 0.0.40
codegen_flags: <defaults>
</compile_context>

<pallas_src>
import functools

import jax
import jax.numpy as jnp
from jax import lax
from jax.experimental import pallas as pl
from jax.experimental.pallas import tpu as pltpu


_TILE_B = 256     # sublane-axis tile (multiple of 8)
_TILE_S = 4096    # lane-axis tile (multiple of 128) -> 4 MiB per f32 input tile


def _round_up(x, m):
    return ((x + m - 1) // m) * m


def _masked_l1_sum_kernel(y_pred_ref, y_true_ref, lens_ref, out_ref, acc_ref,
                          *, nrows, tile_b, tile_s):
    """Per-batch-tile partial sum of |y_pred - y_true| over cols < seq_len[row].

    Grid = (batch tiles, seq tiles); seq axis is the reduction axis.  The
    accumulator is a full-tile VMEM buffer so the steady state is VPU-only;
    the cross-lane reduce + output store run only at the last seq tile.
    """
    i = pl.program_id(0)
    j = pl.program_id(1)

    @pl.when(j == 0)
    def _init():
        acc_ref[...] = jnp.zeros_like(acc_ref)

    yp = y_pred_ref[...].astype(jnp.float32)
    yt = y_true_ref[...].astype(jnp.float32)
    absdiff = jnp.abs(yp - yt)

    # Per-row threshold in tile-local column coordinates (cheaper than adding
    # j*ts to the whole (tb, ts) iota).  Column tails (cols >= S) are covered
    # automatically because len <= S.
    thresh = lens_ref[...] - j * tile_s                      # (tb, 1) int32
    if nrows % tile_b != 0:
        # Batch-tail rows of a partial block read garbage; kill them.
        row_ok = (lax.broadcasted_iota(jnp.int32, (tile_b, 1), 0)
                  + i * tile_b) < nrows
        thresh = jnp.where(row_ok, thresh, 0)

    col = lax.broadcasted_iota(jnp.int32, (tile_b, tile_s), 1)
    # where/select does not propagate NaN/Inf from garbage tail elements.
    acc_ref[...] += jnp.where(col < thresh, absdiff, jnp.float32(0.0))

    @pl.when(j == pl.num_programs(1) - 1)
    def _finalize():
        # One XLU reduce per batch tile; broadcast the scalar across the
        # lane-dense output block, wrapper reads [:, 0, 0].
        out_ref[...] = jnp.full(out_ref.shape, jnp.sum(acc_ref[...]),
                                jnp.float32)


def _avg_pool1d_no_count_pad(y, kernel_size):
    """torch.nn.functional.avg_pool1d(..., stride=1, padding=(k-1)//2,
    count_include_pad=False) on a (B, S) array (odd kernel_size keeps length)."""
    # TODO(synk): fuse this into the Pallas kernel with halo'd seq tiles to
    # avoid the extra HBM pass over y_true when label_smooth is set.
    k = int(kernel_size)
    pad = (k - 1) // 2
    B, S = y.shape
    out_len = S + 2 * pad - k + 1
    ypad = jnp.pad(y, ((0, 0), (pad, pad)))
    vpad = jnp.pad(jnp.ones((B, S), y.dtype), ((0, 0), (pad, pad)))
    acc = jnp.zeros((B, out_len), y.dtype)
    cnt = jnp.zeros((B, out_len), y.dtype)
    for t in range(k):
        acc = acc + lax.dynamic_slice_in_dim(ypad, t, out_len, axis=1)
        cnt = cnt + lax.dynamic_slice_in_dim(vpad, t, out_len, axis=1)
    return acc / cnt


@functools.partial(jax.jit,
                   static_argnames=("label_smooth", "tile_b", "tile_s"))
def _l1_loss_impl(y_pred, y_true, lens, label_smooth=None,
                  tile_b=None, tile_s=None):
    if label_smooth is not None:
        y_true = _avg_pool1d_no_count_pad(y_true, label_smooth)

    B, S = y_pred.shape

    tb = min(_TILE_B if tile_b is None else tile_b, _round_up(B, 8))
    ts = min(_TILE_S if tile_s is None else tile_s, _round_up(S, 128))
    gi = (B + tb - 1) // tb
    gj = (S + ts - 1) // ts

    # Consistent mask & count semantics even if seq_lens > S.
    lens = jnp.clip(lens, 0, S)

    kernel = functools.partial(_masked_l1_sum_kernel,
                               nrows=B, tile_b=tb, tile_s=ts)

    # VMEM budget: 2 inputs x 2 buffers + full-tile accumulator (+ headroom).
    vmem_bytes = int(max(5 * tb * ts * 4 + (2 << 20), 16 << 20))

    partials = pl.pallas_call(
        kernel,
        out_shape=jax.ShapeDtypeStruct((gi, 8, 128), jnp.float32),
        grid_spec=pltpu.PrefetchScalarGridSpec(
            num_scalar_prefetch=0,
            grid=(gi, gj),
            in_specs=[
                pl.BlockSpec((tb, ts), lambda i, j: (i, j)),
                pl.BlockSpec((tb, ts), lambda i, j: (i, j)),
                pl.BlockSpec((tb, 1), lambda i, j: (i, 0)),
            ],
            out_specs=pl.BlockSpec((1, 8, 128), lambda i, j: (i, 0, 0)),
            scratch_shapes=[pltpu.VMEM((tb, ts), jnp.float32)],
        ),
        compiler_params=pltpu.CompilerParams(
            dimension_semantics=("parallel", "arbitrary"),
            vmem_limit_bytes=vmem_bytes),
    )(y_pred, y_true, lens)

    total = jnp.sum(partials[:, 0, 0])
    count = jnp.sum(lens).astype(jnp.float32)
    # Note: count == 0 (all seq_lens zero) yields NaN, matching torch.mean of
    # an empty selection.
    return total / count


def l1_loss(y_pred, y_true, seq_lens=None, label_smooth=None,
            tile_b=None, tile_s=None):
    """Pallas equivalent of L1Loss.forward.

    y_pred, y_true: (batch, seq) float arrays.
    seq_lens: optional per-row valid lengths (list / array of ints).
    label_smooth: optional odd int kernel size for avg_pool1d smoothing.
    tile_b / tile_s: optional tile-size overrides (multiples of 8 / 128).
    """
    B, S = y_pred.shape
    if seq_lens is None:
        lens = jnp.full((B, 1), S, dtype=jnp.int32)
    else:
        lens = jnp.asarray(seq_lens, dtype=jnp.int32).reshape(B, 1)
    return _l1_loss_impl(y_pred, y_true, lens, label_smooth=label_smooth,
                         tile_b=tile_b, tile_s=tile_s)


def _reference(y_pred, y_true, seq_lens=None, label_smooth=None):
    """Pure-JAX reference mirroring the PyTorch L1Loss semantics."""
    if label_smooth is not None:
        y_true = _avg_pool1d_no_count_pad(y_true, label_smooth)
    ad = jnp.abs(y_pred - y_true)
    B, S = y_pred.shape
    if seq_lens is None:
        return jnp.mean(ad)
    lens = jnp.asarray(seq_lens, dtype=jnp.int32).reshape(B, 1)
    mask = (lax.broadcasted_iota(jnp.int32, (B, S), 1) < lens).astype(ad.dtype)
    return jnp.sum(ad * mask) / jnp.sum(mask)


if __name__ == "__main__":
    key = jax.random.PRNGKey(0)
    k1, k2, k3, k4 = jax.random.split(key, 4)

    # Small shapes consistent with the module's (batch, seq) inputs.
    B, S = 2, 16
    y_pred = jax.random.normal(k1, (B, S), dtype=jnp.float32)
    y_true = jax.random.normal(k2, (B, S), dtype=jnp.float32)
    seq_lens = [12, 16]

    # Case 1: plain mean L1 (no mask, no smoothing)
    l1 = jax.block_until_ready(l1_loss(y_pred, y_true))
    r1 = _reference(y_pred, y_true)

    # Case 2: masked by seq_lens + label smoothing (odd kernel size)
    l2 = jax.block_until_ready(l1_loss(y_pred, y_true, seq_lens=seq_lens,
                                       label_smooth=3))
    r2 = _reference(y_pred, y_true, seq_lens=seq_lens, label_smooth=3)

    # Case 3: mask only
    l3 = jax.block_until_ready(l1_loss(y_pred, y_true, seq_lens=seq_lens))
    r3 = _reference(y_pred, y_true, seq_lens=seq_lens)

    # Case 4: exercise multi-tile grid + batch/seq tails (no padding in-HBM)
    # with small tiles so both grid axes have several steps.
    B2, S2 = 10, 300
    yp2 = jax.random.normal(k3, (B2, S2), dtype=jnp.float32)
    yt2 = jax.random.normal(k4, (B2, S2), dtype=jnp.float32)
    sl2 = [37, 300, 0, 299, 128, 1, 250, 64, 200, 13]
    l4 = jax.block_until_ready(l1_loss(yp2, yt2, seq_lens=sl2,
                                       tile_b=8, tile_s=128))
    r4 = _reference(yp2, yt2, seq_lens=sl2)

    assert jnp.allclose(l1, r1, rtol=1e-5, atol=1e-6), (l1, r1)
    assert jnp.allclose(l2, r2, rtol=1e-5, atol=1e-6), (l2, r2)
    assert jnp.allclose(l3, r3, rtol=1e-5, atol=1e-6), (l3, r3)
    assert jnp.allclose(l4, r4, rtol=1e-5, atol=1e-6), (l4, r4)
    print("KERNEL_OK")
</pallas_src>

<mosaic_0001>
module attributes {stable_mosaic.version = 11 : i64} {
  func.func @_masked_l1_sum_kernel(%arg0: i32, %arg1: i32, %arg2: memref<8x128xf32, #tpu.memory_space<vmem>>, %arg3: memref<8x128xf32, #tpu.memory_space<vmem>>, %arg4: memref<8x1xi32, #tpu.memory_space<vmem>>, %arg5: memref<1x8x128xf32, #tpu.memory_space<vmem>>, %arg6: memref<8x128xf32, #tpu.memory_space<vmem>>) attributes {dimension_semantics = [#tpu.dimension_semantics<parallel>, #tpu.dimension_semantics<arbitrary>], iteration_bounds = array<i64: 1, 1>, scalar_prefetch = 0 : i64, scratch_operands = 1 : i64, tpu.core_type = #tpu.core_type<tc>, window_params = [{transform_indices = @transform_0, window_bounds = array<i64: 8, 128>}, {transform_indices = @transform_1, window_bounds = array<i64: 8, 128>}, {transform_indices = @transform_2, window_bounds = array<i64: 8, 1>}, {transform_indices = @transform_3, window_bounds = array<i64: 1, 8, 128>}]} {
    %c0_i32 = arith.constant 0 : i32
    %0 = arith.cmpi eq, %arg1, %c0_i32 : i32
    %1 = arith.extui %0 : i1 to i32
    %c0_i32_0 = arith.constant 0 : i32
    %2 = arith.cmpi ne, %1, %c0_i32_0 : i32
    scf.if %2 {
      %cst_13 = arith.constant 0.000000e+00 : f32
      %30 = vector.broadcast %cst_13 : f32 to vector<8x128xf32>
      %c0_14 = arith.constant 0 : index
      %c0_15 = arith.constant 0 : index
      %31 = vector.load %arg6[%c0_14, %c0_15] : memref<8x128xf32, #tpu.memory_space<vmem>>, vector<8x128xf32>
      tpu.vector_store %arg6[%c0_14, %c0_15], %30 {strides = array<i32>} : memref<8x128xf32, #tpu.memory_space<vmem>>, vector<8x128xf32>,
    } else {
    }
    %c0 = arith.constant 0 : index
    %c0_1 = arith.constant 0 : index
    %3 = vector.load %arg2[%c0, %c0_1] : memref<8x128xf32, #tpu.memory_space<vmem>>, vector<8x128xf32>
    %c0_2 = arith.constant 0 : index
    %c0_3 = arith.constant 0 : index
    %4 = vector.load %arg3[%c0_2, %c0_3] : memref<8x128xf32, #tpu.memory_space<vmem>>, vector<8x128xf32>
    %5 = arith.subf %3, %4 : vector<8x128xf32>
    %6 = math.absf %5 : vector<8x128xf32>
    %c0_4 = arith.constant 0 : index
    %c0_5 = arith.constant 0 : index
    %7 = vector.load %arg4[%c0_4, %c0_5] : memref<8x1xi32, #tpu.memory_space<vmem>>, vector<8x1xi32>
    %c128_i32 = arith.constant 128 : i32
    %8 = arith.muli %arg1, %c128_i32 : i32
    %9 = vector.broadcast %8 : i32 to vector<8x1xi32>
    %10 = arith.subi %7, %9 : vector<8x1xi32>
    %11 = tpu.iota {dimensions = array<i32: 0>} : vector<8x1xi32>
    %c8_i32 = arith.constant 8 : i32
    %12 = arith.muli %arg0, %c8_i32 : i32
    %13 = vector.broadcast %12 : i32 to vector<8x1xi32>
    %14 = arith.addi %11, %13 : vector<8x1xi32>
    %c2_i32 = arith.constant 2 : i32
    %15 = vector.broadcast %c2_i32 : i32 to vector<8x1xi32>
    %16 = arith.cmpi slt, %14, %15 : vector<8x1xi32>
    %c0_i32_6 = arith.constant 0 : i32
    %17 = vector.broadcast %c0_i32_6 : i32 to vector<8x1xi32>
    %18 = arith.select %16, %10, %17 : vector<8x1xi1>, vector<8x1xi32>
    %19 = tpu.iota {dimensions = array<i32: 1>} : vector<8x128xi32>
    %c0_7 = arith.constant 0 : index
    %c0_8 = arith.constant 0 : index
    %20 = vector.load %arg6[%c0_7, %c0_8] : memref<8x128xf32, #tpu.memory_space<vmem>>, vector<8x128xf32>
    %21 = vector.broadcast %18 : vector<8x1xi32> to vector<8x128xi32>
    %22 = arith.cmpi slt, %19, %21 : vector<8x128xi32>
    %cst = arith.constant 0.000000e+00 : f32
    %23 = vector.broadcast %cst : f32 to vector<8x128xf32>
    %24 = arith.select %22, %6, %23 : vector<8x128xi1>, vector<8x128xf32>
    %25 = arith.addf %20, %24 : vector<8x128xf32>
    %c0_9 = arith.constant 0 : index
    %c0_10 = arith.constant 0 : index
    %26 = vector.load %arg6[%c0_9, %c0_10] : memref<8x128xf32, #tpu.memory_space<vmem>>, vector<8x128xf32>
    tpu.vector_store %arg6[%c0_9, %c0_10], %25 {strides = array<i32>} : memref<8x128xf32, #tpu.memory_space<vmem>>, vector<8x128xf32>,
    %c0_i32_11 = arith.constant 0 : i32
    %27 = arith.cmpi eq, %arg1, %c0_i32_11 : i32
    %28 = arith.extui %27 : i1 to i32
    %c0_i32_12 = arith.constant 0 : i32
    %29 = arith.cmpi ne, %28, %c0_i32_12 : i32
    scf.if %29 {
      %c0_13 = arith.constant 0 : index
      %c0_14 = arith.constant 0 : index
      %30 = vector.load %arg6[%c0_13, %c0_14] : memref<8x128xf32, #tpu.memory_space<vmem>>, vector<8x128xf32>
      %31 = vector.shape_cast %30 : vector<8x128xf32> to vector<1x8x128xf32>
      %cst_15 = arith.constant dense<0.000000e+00> : vector<1xf32>
      %32 = vector.multi_reduction <add>, %31, %cst_15 [1, 2] : vector<1x8x128xf32> to vector<1xf32>
      %33 = vector.shape_cast %32 : vector<1xf32> to vector<1x1x1xf32>
      %34 = vector.extract %33[0, 0, 0] : f32 from vector<1x1x1xf32>
      %35 = vector.broadcast %34 : f32 to vector<1x8x128xf32>
      %c0_16 = arith.constant 0 : index
      %c0_17 = arith.constant 0 : index
      %c0_18 = arith.constant 0 : index
      %36 = vector.load %arg5[%c0_16, %c0_17, %c0_18] : memref<1x8x128xf32, #tpu.memory_space<vmem>>, vector<1x8x128xf32>
      tpu.vector_store %arg5[%c0_16, %c0_17, %c0_18], %35 {strides = array<i32>} : memref<1x8x128xf32, #tpu.memory_space<vmem>>, vector<1x8x128xf32>,
    } else {
    }
    return
  }
  func.func @transform_0(%arg0: i32, %arg1: i32) -> (i32, i32) {
    %c0_i32 = arith.constant 0 : i32
    return %arg0, %arg1 : i32, i32
  }
  func.func @transform_1(%arg0: i32, %arg1: i32) -> (i32, i32) {
    %c0_i32 = arith.constant 0 : i32
    return %arg0, %arg1 : i32, i32
  }
  func.func @transform_2(%arg0: i32, %arg1: i32) -> (i32, i32) {
    %c0_i32 = arith.constant 0 : i32
    %c0_i32_0 = arith.constant 0 : i32
    return %arg0, %c0_i32 : i32, i32
  }
  func.func @transform_3(%arg0: i32, %arg1: i32) -> (i32, i32, i32) {
    %c0_i32 = arith.constant 0 : i32
    %c0_i32_0 = arith.constant 0 : i32
    %c0_i32_1 = arith.constant 0 : i32
    return %arg0, %c0_i32, %c0_i32_0 : i32, i32, i32
  }
}

</mosaic_0001>

<llo_original>
// kernel: _l1_loss_impl.1
$region0: #{_l1_loss_impl.1}
  #allocation0 [shape = 'u32[]', space=smem, size = 0x4, offset = 0x4, fixed_abs, tag = 'smem constant byte address 0x4 - core index']
  #allocation1 [shape = 'u32[144,128]{1,0:T(1,128)}', space=vmem, size = 0x12000, scoped, tag = 'internal scratch']
  #allocation2 [shape = 'f32[8,128]{1,0:T(8,128)}', space=vmem, size = 0x1000, scoped, tag = 'scratch operand']
  %s0 = inlined_call_operand.vmem [shape: f32[2,16], index: 0, kind: input, shape index: {}]
  %s1 = inlined_call_operand.vmem [shape: f32[2,16], index: 1, kind: input, shape index: {}]
  %s2 = inlined_call_operand.vmem [shape: s32[2,1], index: 2, kind: input, shape index: {}]
  %s3 = inlined_call_operand.vmem [shape: f32[1,8,128], index: 3, kind: output, shape index: {}]
  %s4 = sld [smem:[#allocation0]]
  $region30: #{_l1_loss_impl.1} parent=0
    _
  %s6 = ssub.s32 1, %s4
  %s7 = scalar_select 0, %s6, %s4
  // Predicated region
  $region2: #{_l1_loss_impl.1} parent=0 // pred_check
    _
  $region3: #{_l1_loss_impl.1} parent=0 // pred_check_branch
    %9 = sbr.rel (0) target = $region5
  $region4: #{_l1_loss_impl.1} parent=0 // pred_region
    _
  $region5: #{_l1_loss_impl.1} parent=0 // pred_fallthru
    _
  // Predicated region
  $region6: #{_l1_loss_impl.1} parent=0 // pred_check
    _
  $region7: #{_l1_loss_impl.1} parent=0 // pred_check_branch
    %11 = sbr.rel (0) target = $region9
  $region8: #{_l1_loss_impl.1} parent=0 // pred_region
    _
  $region9: #{_l1_loss_impl.1} parent=0 // pred_fallthru
    _
  // Predicated region
  $region10: #{_l1_loss_impl.1} parent=0 // pred_check
    _
  $region11: #{_l1_loss_impl.1} parent=0 // pred_check_branch
    %13 = sbr.rel (0) target = $region13
  $region12: #{_l1_loss_impl.1} parent=0 // pred_region
    _
  $region13: #{_l1_loss_impl.1} parent=0 // pred_fallthru
    _
  %p14 = scmp.eq.s32.totalorder 0, 0
  // Predicated region
  $region14: #{_l1_loss_impl.1} parent=0 // pred_check
    %p15 = pneg %p14
  $region15: #{_l1_loss_impl.1} parent=0 // pred_check_branch
    %17 = sbr.rel (%p15) target = $region17
  $region16: #{_l1_loss_impl.1} parent=0 // pred_region
    %18 = vst [vmem:[#allocation2] sm:$0xff] 0.0
  $region17: #{_l1_loss_impl.1} parent=0 // pred_fallthru
    _
  %v19 = vld [vmem:[%s0] sm:$0xff]
  %v20 = vld [vmem:[%s1] sm:$0xff]
  %v21 = vsub.f32 %v19, %v20
  %v22 = vand.u32 2147483647, %v21
  %v23 = vld [vmem:[%s2] sm:$0xff]
  %s24 = smul.u32 0, 128
  %v25 = vstv %s24
  %v26 = vsub.s32 %v23, %v25
  %v27 = vlaneseq
  %v28 = vshrl.u32 %v27, 7
  %s29 = smul.u32 0, 8
  %v30 = vstv %s29
  %v31 = vadd.s32 %v28, %v30
  %vm32 = vcmp.lt.s32.totalorder %v31, 2
  %v33 = vsel %vm32, %v26, 0
  %v34 = vlaneseq
  %v35 = vand.u32 %v34, 127
  %v36 = vld [vmem:[#allocation2] sm:$0xff]
  %37 = vset.pattern.permute.xlu0 0
  %38 = vperm.xlu0 %37, %v33
  %v39 = vpop.permute.xlu0 %38
  %vm40 = vcmp.lt.s32.totalorder %v35, %v39
  %v41 = vsel %vm40, %v22, 0.0
  %v42 = vadd.f32 %v36, %v41
  %43 = vst [vmem:[#allocation2] sm:$0xff] %v42
  // Predicated region
  $region18: #{_l1_loss_impl.1} parent=0 // pred_check
    %p44 = pneg %p14
  $region19: #{_l1_loss_impl.1} parent=0 // pred_check_branch
    %46 = sbr.rel (%p44) target = $region21
  $region20: #{_l1_loss_impl.1} parent=0 // pred_region
    %v47 = vld [vmem:[#allocation2] sm:$0xff]
    %48 = vadd.xlane.f32.xlu0 %v47
    %v49 = vpop.xlane.xlu0 %48
    %v50 = vrot.slane %v49, 4
    %v51 = vadd.f32 %v49, %v50
    %v52 = vrot.slane %v51, 2
    %v53 = vadd.f32 %v51, %v52
    %v54 = vrot.slane %v53, 1
    %v55 = vadd.f32 %v53, %v54
    %s56 = vtos %v55
    %v57 = vstv %s56
    %58 = vst [vmem:[%s3] sm:$0xff] %v57
  $region21: #{_l1_loss_impl.1} parent=0 // pred_fallthru
    _
  // Predicated region
  $region22: #{_l1_loss_impl.1} parent=0 // pred_check
    _
  $region23: #{_l1_loss_impl.1} parent=0 // pred_check_branch
    %60 = sbr.rel (0) target = $region25
  $region24: #{_l1_loss_impl.1} parent=0 // pred_region
    _
  $region25: #{_l1_loss_impl.1} parent=0 // pred_fallthru
    _
  // Predicated region
  $region26: #{_l1_loss_impl.1} parent=0 // pred_check
    _
  $region27: #{_l1_loss_impl.1} parent=0 // pred_check_branch
    %62 = sbr.rel (0) target = $region29
  $region28: #{_l1_loss_impl.1} parent=0 // pred_region
    _
  $region29: #{_l1_loss_impl.1} parent=0 // pred_fallthru
    _

</llo_original>
